<compile_context>
chip_gen: v6e
topology: v6e:2x2x1
jax: 0.10.0
libtpu: 0.0.40
codegen_flags: <defaults>
</compile_context>

<pallas_src>
import jax
import jax.numpy as jnp
from jax import lax
from jax.experimental import pallas as pl
from jax.experimental.pallas import tpu as pltpu

K = 8
D_IN = 300 + K            # 308
HIDDEN = 100
N_OUT = 2
N_NEIGH = 5

# Lane-dense padded sizes (last dims are multiples of 128).
D_IN_PAD = 384            # 308 -> 3 * 128
HID_PAD = 128             # 100 -> 128
OUT_PAD = 128             # 2   -> 128 (ll computed lane-dense, sliced outside)
UU_CHUNK_MAX = 2048       # gather-source chunk size (bounds VMEM on v7x)


# --------------------------------------------------------------------------
# Chip limits: physical VMEM (for clamping limits) and row tile choice.
# --------------------------------------------------------------------------
def _tpu_limits():
    vmem_phys = 64 << 20                       # conservative default (v7x)
    try:
        info = pltpu.get_tpu_info()
        vmem_phys = int(getattr(info, "vmem_capacity_bytes", vmem_phys))
    except Exception:
        pass
    row_tile = 512 if vmem_phys >= (128 << 20) else 256   # v5e/v6e vs v7x
    return row_tile, vmem_phys


def _clamp_vmem(budget, vmem_phys):
    return int(min(max(budget, 32 << 20), vmem_phys - (4 << 20)))


# --------------------------------------------------------------------------
# Kernel 1: ModuleA  (Linear(D_in, 100) + ReLU), row-tiled, bf16 operands.
# --------------------------------------------------------------------------
def _module_a_kernel(vv_ref, wa_ref, ba_ref, uu_ref):
    acc = jnp.dot(vv_ref[...], wa_ref[...], preferred_element_type=jnp.float32)
    uu_ref[...] = jnp.maximum(acc + ba_ref[...], 0.0).astype(uu_ref.dtype)


# --------------------------------------------------------------------------
# Kernel 2: one iteration step, gather chunked over the uu dimension.
# --------------------------------------------------------------------------
def _step_kernel(idx_ref, mask_ref, hh_ref, uu_ref,
                 woh_ref, boh_ref, wc_ref, bc_ref, wd_ref, bd_ref,
                 ll_ref, hh_out_ref, uu_out_ref, ww_acc):
    k = pl.program_id(1)
    chunk = uu_ref.shape[0]

    @pl.when(k == 0)
    def _():
        ww_acc[...] = jnp.zeros_like(ww_acc)

    # concat(): gather the 5 neighbour rows of uu, ModuleB sums them.  Fused:
    # ONE bf16 counts matrix per chunk (duplicates accumulate, counts <= 5 are
    # exact in bf16) and ONE MXU matmul against the streamed uu chunk.
    idx = idx_ref[...] - k * chunk                          # chunk-local indices
    col = lax.broadcasted_iota(jnp.int32, (1, chunk), 1)    # (1, chunk), no big iota
    oh = (col == idx[:, 0:1]).astype(jnp.bfloat16)          # seed from 1st compare
    for j in range(1, N_NEIGH):                             # static unroll: 4 adds
        oh = oh + (col == idx[:, j:j + 1]).astype(jnp.bfloat16)
    ww_acc[...] += jnp.dot(oh, uu_ref[...], preferred_element_type=jnp.float32)

    @pl.when(k == pl.num_programs(1) - 1)
    def _():
        # y[indices_not_found] = 0, then combine with hh (ModuleB).
        bb = ww_acc[...] * mask_ref[...] + hh_ref[...].astype(jnp.float32)
        bb16 = bb.astype(jnp.bfloat16)

        # ModuleB2(100, 100, 100): wO|wH fused into one 256-wide matmul.
        ohh = (jnp.dot(bb16, woh_ref[...], preferred_element_type=jnp.float32)
               + boh_ref[...])
        oo = jnp.maximum(ohh[:, :HID_PAD], 0.0)             # ReLU half
        hh_new = jnp.tanh(ohh[:, HID_PAD:])                 # tanh half

        # ModuleC(100, 2): Linear (computed lane-dense as (tile, 128)).
        ll = (jnp.dot(oo.astype(jnp.bfloat16), wc_ref[...],
                      preferred_element_type=jnp.float32) + bc_ref[...])

        # ModuleD(100, 100): Linear + ReLU (next iteration's gather source).
        uu_new = jnp.maximum(
            jnp.dot(hh_new.astype(jnp.bfloat16), wd_ref[...],
                    preferred_element_type=jnp.float32) + bd_ref[...], 0.0)

        ll_ref[...] = ll
        hh_out_ref[...] = hh_new.astype(hh_out_ref.dtype)
        uu_out_ref[...] = uu_new.astype(uu_out_ref.dtype)


# --------------------------------------------------------------------------
# VMEM budgets computed from the actual tile sizes (+ headroom), clamped to
# the physical per-core VMEM.
# --------------------------------------------------------------------------
def _vmem_bytes_a(row_tile, vmem_phys):
    b = 2 * row_tile * D_IN_PAD * 2                        # vv tiles (bf16, dbl-buf)
    b += 2 * row_tile * HID_PAD * 2                        # uu output tiles (bf16)
    b += 2 * (D_IN_PAD * HID_PAD * 2 + HID_PAD * 4)        # weights + bias
    return _clamp_vmem(b + (4 << 20), vmem_phys)


def _vmem_bytes_step(row_tile, uu_chunk, vmem_phys):
    b = 2 * uu_chunk * HID_PAD * 2                         # uu chunks (bf16, dbl-buf)
    b += 2 * row_tile * uu_chunk * 2                       # one-hot temporaries (bf16)
    b += 2 * row_tile * (N_NEIGH * 4 + 4 + HID_PAD * 2)    # idx / mask / hh tiles
    b += 2 * row_tile * (OUT_PAD * 4 + 2 * HID_PAD * 2)    # ll / hh / uu output tiles
    b += 2 * (HID_PAD * 2 * HID_PAD * 2 + 2 * HID_PAD * 4  # wO|wH, bO|bH
              + HID_PAD * OUT_PAD * 2 + OUT_PAD * 4        # wC, bC
              + HID_PAD * HID_PAD * 2 + HID_PAD * 4)       # wD, bD
    b += row_tile * HID_PAD * 4                            # ww_acc scratch
    return _clamp_vmem(b + (8 << 20), vmem_phys)


# --------------------------------------------------------------------------
# pallas_call wrappers
# --------------------------------------------------------------------------
def _run_module_a(vv_pad, wa, ba, row_tile, vmem_phys):
    n_pad = vv_pad.shape[0]
    flops = 2 * n_pad * D_IN_PAD * HID_PAD
    bytes_accessed = (vv_pad.size * 2 + wa.size * 2 + ba.size * 4
                      + n_pad * HID_PAD * 2)
    return pl.pallas_call(
        _module_a_kernel,
        out_shape=jax.ShapeDtypeStruct((n_pad, HID_PAD), jnp.bfloat16),
        grid=(n_pad // row_tile,),
        in_specs=[
            pl.BlockSpec((row_tile, D_IN_PAD), lambda i: (i, 0)),
            pl.BlockSpec((D_IN_PAD, HID_PAD), lambda i: (0, 0)),
            pl.BlockSpec((1, HID_PAD), lambda i: (0, 0)),
        ],
        out_specs=pl.BlockSpec((row_tile, HID_PAD), lambda i: (i, 0)),
        compiler_params=pltpu.CompilerParams(
            dimension_semantics=("parallel",),
            vmem_limit_bytes=_vmem_bytes_a(row_tile, vmem_phys)),
        cost_estimate=pl.CostEstimate(
            flops=flops, transcendentals=0, bytes_accessed=bytes_accessed),
    )(vv_pad, wa, ba)


def _run_step(idx_pad, mask_pad, hh, uu, woh, boh, wc, bc, wd, bd,
              row_tile, uu_chunk, vmem_phys):
    n_pad = uu.shape[0]
    n_row = n_pad // row_tile
    n_chunk = n_pad // uu_chunk
    flops = (2 * n_pad * n_pad * HID_PAD                         # chunked gather
             + 2 * n_pad * HID_PAD * (2 * HID_PAD + OUT_PAD + HID_PAD))
    bytes_accessed = (idx_pad.size * 4 + mask_pad.size * 4
                      + n_row * uu.size * 2                      # uu re-streamed/row tile
                      + hh.size * 2
                      + woh.size * 2 + wc.size * 2 + wd.size * 2
                      + n_pad * (OUT_PAD * 4 + 2 * HID_PAD * 2))

    return pl.pallas_call(
        _step_kernel,
        out_shape=(
            jax.ShapeDtypeStruct((n_pad, OUT_PAD), jnp.float32),   # ll (lane-dense)
            jax.ShapeDtypeStruct((n_pad, HID_PAD), jnp.bfloat16),  # hh
            jax.ShapeDtypeStruct((n_pad, HID_PAD), jnp.bfloat16),  # uu
        ),
        grid_spec=pltpu.PrefetchScalarGridSpec(
            num_scalar_prefetch=0,
            grid=(n_row, n_chunk),
            in_specs=[
                pl.BlockSpec((row_tile, N_NEIGH), lambda i, k: (i, 0)),   # indices
                pl.BlockSpec((row_tile, 1), lambda i, k: (i, 0)),         # not-found mask
                pl.BlockSpec((row_tile, HID_PAD), lambda i, k: (i, 0)),   # hh tile (bf16)
                pl.BlockSpec((uu_chunk, HID_PAD), lambda i, k: (k, 0)),   # uu chunk (bf16)
                pl.BlockSpec((HID_PAD, 2 * HID_PAD), lambda i, k: (0, 0)),  # wO|wH
                pl.BlockSpec((1, 2 * HID_PAD), lambda i, k: (0, 0)),        # bO|bH
                pl.BlockSpec((HID_PAD, OUT_PAD), lambda i, k: (0, 0)),      # wC
                pl.BlockSpec((1, OUT_PAD), lambda i, k: (0, 0)),            # bC
                pl.BlockSpec((HID_PAD, HID_PAD), lambda i, k: (0, 0)),      # wD
                pl.BlockSpec((1, HID_PAD), lambda i, k: (0, 0)),            # bD
            ],
            out_specs=(
                pl.BlockSpec((row_tile, OUT_PAD), lambda i, k: (i, 0)),
                pl.BlockSpec((row_tile, HID_PAD), lambda i, k: (i, 0)),
                pl.BlockSpec((row_tile, HID_PAD), lambda i, k: (i, 0)),
            ),
            scratch_shapes=[pltpu.VMEM((row_tile, HID_PAD), jnp.float32)],
        ),
        compiler_params=pltpu.CompilerParams(
            dimension_semantics=("parallel", "arbitrary"),
            vmem_limit_bytes=_vmem_bytes_step(row_tile, uu_chunk, vmem_phys)),
        cost_estimate=pl.CostEstimate(
            flops=flops, transcendentals=n_pad * HID_PAD,
            bytes_accessed=bytes_accessed),
    )(idx_pad, mask_pad, hh, uu, woh, boh, wc, bc, wd, bd)


# --------------------------------------------------------------------------
# Host-side wrapper (padding + iteration loop)
# --------------------------------------------------------------------------
def _pad2d(x, rows, cols):
    x = jnp.asarray(x, jnp.float32)
    return jnp.pad(x, ((0, rows - x.shape[0]), (0, cols - x.shape[1])))


def simple_doc_proc_forward(indices, indices_not_found, vv, params, iterations=1):
    num_words = vv.shape[0]
    row_tile, vmem_phys = _tpu_limits()

    # Row padding: multiple of row_tile; if larger than one chunk, also a
    # multiple of UU_CHUNK_MAX (2048 is a multiple of both 256 and 512).
    n_pad = int(pl.cdiv(num_words, row_tile)) * row_tile
    if n_pad > UU_CHUNK_MAX:
        n_pad = int(pl.cdiv(n_pad, UU_CHUNK_MAX)) * UU_CHUNK_MAX
        uu_chunk = UU_CHUNK_MAX
    else:
        uu_chunk = n_pad                                  # small-N: single chunk

    # vv pre-cast to bf16 on the host (halves the ModuleA HBM read).
    vv_pad = _pad2d(vv, n_pad, D_IN_PAD).astype(jnp.bfloat16)
    idx_pad = jnp.zeros((n_pad, N_NEIGH), jnp.int32)
    idx_pad = idx_pad.at[:num_words].set(jnp.asarray(indices, jnp.int32))
    nf_mask = jnp.where(jnp.asarray(indices_not_found, bool), 0.0, 1.0)
    mask_pad = jnp.zeros((n_pad, 1), jnp.float32)
    mask_pad = mask_pad.at[:num_words, 0].set(nf_mask.astype(jnp.float32))

    # Zero-pad parameters to lane-dense shapes (padded lanes stay exactly 0);
    # weights are stored bf16 since they are only MXU operands.
    wa = _pad2d(params["wA"], D_IN_PAD, HID_PAD).astype(jnp.bfloat16)
    ba = _pad2d(params["bA"], 1, HID_PAD)
    # wO / wH fused into one (128, 256) weight so B2 is a single 256-wide matmul.
    woh = jnp.concatenate([_pad2d(params["wO"], HID_PAD, HID_PAD),
                           _pad2d(params["wH"], HID_PAD, HID_PAD)],
                          axis=1).astype(jnp.bfloat16)
    boh = jnp.concatenate([_pad2d(params["bO"], 1, HID_PAD),
                           _pad2d(params["bH"], 1, HID_PAD)], axis=1)
    wc = _pad2d(params["wC"], HID_PAD, OUT_PAD).astype(jnp.bfloat16)
    bc = _pad2d(params["bC"], 1, OUT_PAD)
    wd = _pad2d(params["wD"], HID_PAD, HID_PAD).astype(jnp.bfloat16)
    bd = _pad2d(params["bD"], 1, HID_PAD)

    uu = _run_module_a(vv_pad, wa, ba, row_tile, vmem_phys)   # (n_pad, 128) bf16
    hh = jnp.zeros((n_pad, HID_PAD), jnp.bfloat16)            # carried in bf16
    ll = None
    for _ in range(iterations):                               # model default: 1
        ll, hh, uu = _run_step(idx_pad, mask_pad, hh, uu,
                               woh, boh, wc, bc, wd, bd,
                               row_tile, uu_chunk, vmem_phys)
    return ll[:num_words, :N_OUT]


# --------------------------------------------------------------------------
# Parameters + pure-JAX f32 reference (same assumed module semantics)
# --------------------------------------------------------------------------
def init_params(key):
    ks = jax.random.split(key, 5)

    def lin(k, fan_in, fan_out):
        kw, kb = jax.random.split(k)
        scale = 1.0 / (fan_in ** 0.5)
        w = jax.random.uniform(kw, (fan_in, fan_out), jnp.float32, -scale, scale)
        b = jax.random.uniform(kb, (1, fan_out), jnp.float32, -scale, scale)
        return w, b

    wA, bA = lin(ks[0], D_IN, HIDDEN)
    wO, bO = lin(ks[1], HIDDEN, HIDDEN)
    wH, bH = lin(ks[2], HIDDEN, HIDDEN)
    wC, bC = lin(ks[3], HIDDEN, N_OUT)
    wD, bD = lin(ks[4], HIDDEN, HIDDEN)
    return dict(wA=wA, bA=bA, wO=wO, bO=bO, wH=wH, bH=bH,
                wC=wC, bC=bC, wD=wD, bD=bD)


def reference_forward(indices, indices_not_found, vv, params, iterations=1):
    num_words = vv.shape[0]
    mask = jnp.where(jnp.asarray(indices_not_found, bool), 0.0, 1.0)[:, None]
    uu = jnp.maximum(vv @ params["wA"] + params["bA"], 0.0)
    hh = jnp.zeros((num_words, HIDDEN), jnp.float32)
    ll = None
    for _ in range(iterations):
        ww = sum(uu[indices[:, j]] for j in range(N_NEIGH)) * mask
        bb = ww + hh
        oo = jnp.maximum(bb @ params["wO"] + params["bO"], 0.0)
        hh = jnp.tanh(bb @ params["wH"] + params["bH"])
        ll = oo @ params["wC"] + params["bC"]
        uu = jnp.maximum(hh @ params["wD"] + params["bD"], 0.0)
    return ll


if __name__ == "__main__":
    key = jax.random.PRNGKey(0)
    k_vv, k_idx, k_nf, k_par = jax.random.split(key, 4)

    num_words = 16
    vv = jax.random.normal(k_vv, (num_words, D_IN), jnp.float32)
    indices = jax.random.randint(k_idx, (num_words, N_NEIGH), 0, num_words,
                                 dtype=jnp.int32)
    indices_not_found = jax.random.bernoulli(k_nf, 0.2, (num_words,))
    params = init_params(k_par)

    ll = simple_doc_proc_forward(indices, indices_not_found, vv, params)
    ll = jax.block_until_ready(ll)
    assert ll.shape == (num_words, N_OUT) and ll.dtype == jnp.float32

    ll_ref = reference_forward(indices, indices_not_found, vv, params)
    max_err = float(jnp.max(jnp.abs(ll - ll_ref)))
    assert max_err < 0.15, f"kernel/reference mismatch: max abs err {max_err}"
    print("KERNEL_OK")
</pallas_src>

<mosaic_0001>
module attributes {stable_mosaic.version = 11 : i64} {
  func.func @_module_a_kernel(%arg0: i32, %arg1: memref<256x384xbf16, #tpu.memory_space<vmem>>, %arg2: memref<384x128xbf16, #tpu.memory_space<vmem>>, %arg3: memref<1x128xf32, #tpu.memory_space<vmem>>, %arg4: memref<256x128xbf16, #tpu.memory_space<vmem>>) attributes {dimension_semantics = [#tpu.dimension_semantics<parallel>], iteration_bounds = array<i64: 1>, scalar_prefetch = 0 : i64, scratch_operands = 0 : i64, tpu.core_type = #tpu.core_type<tc>, window_params = [{transform_indices = @transform_0, window_bounds = array<i64: 256, 384>}, {pipeline_mode = #tpu.pipeline_mode<synchronous>, transform_indices = @transform_1, window_bounds = array<i64: 384, 128>}, {pipeline_mode = #tpu.pipeline_mode<synchronous>, transform_indices = @transform_2, window_bounds = array<i64: 1, 128>}, {transform_indices = @transform_3, window_bounds = array<i64: 256, 128>}]} {
    %c0 = arith.constant 0 : index
    %c0_0 = arith.constant 0 : index
    %0 = vector.load %arg1[%c0, %c0_0] : memref<256x384xbf16, #tpu.memory_space<vmem>>, vector<256x384xbf16>
    %c0_1 = arith.constant 0 : index
    %c0_2 = arith.constant 0 : index
    %1 = vector.load %arg2[%c0_1, %c0_2] : memref<384x128xbf16, #tpu.memory_space<vmem>>, vector<384x128xbf16>
    %cst = arith.constant dense<0.000000e+00> : vector<256x128xf32>
    %2 = tpu.matmul %0, %1, %cst {dimension_numbers = #tpu.dot_dimension_numbers<[1], [0], [0], [1], [0, 0, 1, 1], [], []>} : vector<256x384xbf16>, vector<384x128xbf16>, vector<256x128xf32> -> vector<256x128xf32>
    %c0_3 = arith.constant 0 : index
    %c0_4 = arith.constant 0 : index
    %3 = vector.load %arg3[%c0_3, %c0_4] : memref<1x128xf32, #tpu.memory_space<vmem>>, vector<1x128xf32>
    %4 = vector.broadcast %3 : vector<1x128xf32> to vector<256x128xf32>
    %5 = arith.addf %2, %4 : vector<256x128xf32>
    %cst_5 = arith.constant 0.000000e+00 : f32
    %6 = vector.broadcast %cst_5 : f32 to vector<256x128xf32>
    %7 = arith.maximumf %5, %6 : vector<256x128xf32>
    %8 = arith.truncf %7 : vector<256x128xf32> to vector<256x128xbf16>
    %c0_6 = arith.constant 0 : index
    %c0_7 = arith.constant 0 : index
    %9 = vector.load %arg4[%c0_6, %c0_7] : memref<256x128xbf16, #tpu.memory_space<vmem>>, vector<256x128xbf16>
    tpu.vector_store %arg4[%c0_6, %c0_7], %8 {strides = array<i32>} : memref<256x128xbf16, #tpu.memory_space<vmem>>, vector<256x128xbf16>,
    return
  }
  func.func @transform_0(%arg0: i32) -> (i32, i32) {
    %c0_i32 = arith.constant 0 : i32
    %c0_i32_0 = arith.constant 0 : i32
    return %arg0, %c0_i32 : i32, i32
  }
  func.func @transform_1(%arg0: i32) -> (i32, i32) {
    %c0_i32 = arith.constant 0 : i32
    %c0_i32_0 = arith.constant 0 : i32
    %c0_i32_1 = arith.constant 0 : i32
    return %c0_i32, %c0_i32_0 : i32, i32
  }
  func.func @transform_2(%arg0: i32) -> (i32, i32) {
    %c0_i32 = arith.constant 0 : i32
    %c0_i32_0 = arith.constant 0 : i32
    %c0_i32_1 = arith.constant 0 : i32
    return %c0_i32, %c0_i32_0 : i32, i32
  }
  func.func @transform_3(%arg0: i32) -> (i32, i32) {
    %c0_i32 = arith.constant 0 : i32
    %c0_i32_0 = arith.constant 0 : i32
    return %arg0, %c0_i32 : i32, i32
  }
}

</mosaic_0001>

<llo_original>
// kernel: tpu_custom_call.1
$region0: #{tpu_custom_call.1}
  #allocation0 [shape = 'u32[]', space=smem, size = 0x4, offset = 0x4, fixed_abs, tag = 'smem constant byte address 0x4 - core index']
  #allocation1 [shape = 'u32[144,128]{1,0:T(1,128)}', space=vmem, size = 0x12000, scoped, tag = 'internal scratch']
  %s0 = inlined_call_operand.hbm [shape: bf16[256,384], index: 0, kind: input, shape index: {}]
  %s1 = inlined_call_operand.hbm [shape: bf16[384,128], index: 1, kind: input, shape index: {}]
  %s2 = inlined_call_operand.vmem [shape: f32[1,128], index: 2, kind: input, shape index: {}]
  %s3 = inlined_call_operand.hbm [shape: bf16[256,128], index: 3, kind: output, shape index: {}]
  %s4 = sld [smem:[#allocation0]]
  $region30: #{tpu_custom_call.1} parent=0
    _
  %s6 = ssub.s32 1, %s4
  %s7 = scalar_select 0, %s6, %s4
  $region1: #{tpu_custom_call.1} parent=0
    #allocation2 [shape = 'u8[196608]{0}', space=vmem, size = 0x30000, scoped, tag = 'input window, operand 0, single buffered']
    #allocation3 [shape = 's32[1]{0}', space=sflag, size = 0x4, scoped, tag = 'scoped memory for tpu_custom_call.1']
    #allocation4 [shape = 's32[1]{0}', space=sflag, size = 0x4, scoped, tag = 'scoped memory for tpu_custom_call.1']
    #allocation5 [shape = 'u8[98304]{0}', space=vmem, size = 0x18000, scoped, tag = 'input window, operand 1, single buffered']
    #allocation6 [shape = 's32[1]{0}', space=sflag, size = 0x4, scoped, tag = 'scoped memory for tpu_custom_call.1']
    #allocation7 [shape = 'u8[65536]{0}', space=vmem, size = 0x10000, scoped, tag = 'output window, operand 0, single buffered']
    %8 = vsyncpa [#allocation3], 0
    %9 = vsyncpa [#allocation6], 0
    %10 = vsyncpa [#allocation4], 0
    // Predicated region
    $region2: #{tpu_custom_call.1} parent=1 // pred_check
      _
    $region3: #{tpu_custom_call.1} parent=1 // pred_check_branch
      %12 = sbr.rel (0) target = $region5
    $region4: #{tpu_custom_call.1} parent=1 // pred_region
      %s14 = ssub.s32 6144, 6144
      %15 = vsyncadd [#allocation3], %s14
      %s16 = sshll.u32 [#allocation2], 4
      %s17 = int_to_ptr.vmem [resolvable:$true] %s16
      %22 = dma.hbm_to_vmem [thread:$0]  %s0, 6144, %s17, [#allocation3], 192, 192, 12
    $region5: #{tpu_custom_call.1} parent=1 // pred_fallthru
      _
    // Predicated region
    $region6: #{tpu_custom_call.1} parent=1 // pred_check
      _
    $region7: #{tpu_custom_call.1} parent=1 // pred_check_branch
      %24 = sbr.rel (0) target = $region9
    $region8: #{tpu_custom_call.1} parent=1 // pred_region
      %s26 = ssub.s32 3072, 3072
      %27 = vsyncadd [#allocation6], %s26
      %s28 = sshll.u32 [#allocation5], 4
      %s29 = int_to_ptr.vmem [resolvable:$true] %s28
      %34 = dma.hbm_to_vmem [thread:$0]  %s1, 3072, %s29, [#allocation6], 64, 64, 4
    $region9: #{tpu_custom_call.1} parent=1 // pred_fallthru
      _
    // Predicated region
    $region10: #{tpu_custom_call.1} parent=1 // pred_check
      _
    $region11: #{tpu_custom_call.1} parent=1 // pred_check_branch
      %36 = sbr.rel (0) target = $region13
    $region12: #{tpu_custom_call.1} parent=1 // pred_region
      _
    $region13: #{tpu_custom_call.1} parent=1 // pred_fallthru
      _
    // Predicated region
    $region14: #{tpu_custom_call.1} parent=1 // pred_check
      _
    $region15: #{tpu_custom_call.1} parent=1 // pred_check_branch
      %38 = sbr.rel (0) target = $region17
    $region16: #{tpu_custom_call.1} parent=1 // pred_region
      %39 = dma.done [#allocation3], 6144
    $region17: #{tpu_custom_call.1} parent=1 // pred_fallthru
      _
    // Predicated region
    $region18: #{tpu_custom_call.1} parent=1 // pred_check
      _
    $region19: #{tpu_custom_call.1} parent=1 // pred_check_branch
      %41 = sbr.rel (0) target = $region21
    $region20: #{tpu_custom_call.1} parent=1 // pred_region
      %42 = dma.done [#allocation6], 3072
    $region21: #{tpu_custom_call.1} parent=1 // pred_fallthru
      _
    %v44 = vld [vmem:[#allocation2] sm:$0xff]
    %v45 = vld [vmem:[#allocation2 + $0x8] sm:$0xf]
    %v46 = vld [vmem:[#allocation2 + $0xc] sm:$0xff]
    %v47 = vld [vmem:[#allocation2 + $0x14] sm:$0xf]
    %v48 = vld [vmem:[#allocation2 + $0x18] sm:$0xff]
    %v49 = vld [vmem:[#allocation2 + $0x20] sm:$0xf]
    %v50 = vld [vmem:[#allocation2 + $0x24] sm:$0xff]
    %v51 = vld [vmem:[#allocation2 + $0x2c] sm:$0xf]
    %v52 = vld [vmem:[#allocation2 + $0x30] sm:$0xff]
    %v53 = vld [vmem:[#allocation2 + $0x38] sm:$0xf]
    %v54 = vld [vmem:[#allocation2 + $0x3c] sm:$0xff]
    %v55 = vld [vmem:[#allocation2 + $0x44] sm:$0xf]
    %v56 = vld [vmem:[#allocation2 + $0x48] sm:$0xff]
    %v57 = vld [vmem:[#allocation2 + $0x50] sm:$0xf]
    %v58 = vld [vmem:[#allocation2 + $0x54] sm:$0xff]
    %v59 = vld [vmem:[#allocation2 + $0x5c] sm:$0xf]
    %v60 = vld [vmem:[#allocation2 + $0x60] sm:$0xff]
    %v61 = vld [vmem:[#allocation2 + $0x68] sm:$0xf]
    %v62 = vld [vmem:[#allocation2 + $0x6c] sm:$0xff]
    %v63 = vld [vmem:[#allocation2 + $0x74] sm:$0xf]
    %v64 = vld [vmem:[#allocation2 + $0x78] sm:$0xff]
    %v65 = vld [vmem:[#allocation2 + $0x80] sm:$0xf]
    %v66 = vld [vmem:[#allocation2 + $0x84] sm:$0xff]
    %v67 = vld [vmem:[#allocation2 + $0x8c] sm:$0xf]
    %v68 = vld [vmem:[#allocation2 + $0x90] sm:$0xff]
    %v69 = vld [vmem:[#allocation2 + $0x98] sm:$0xf]
    %v70 = vld [vmem:[#allocation2 + $0x9c] sm:$0xff]
    %v71 = vld [vmem:[#allocation2 + $0xa4] sm:$0xf]
    %v72 = vld [vmem:[#allocation2 + $0xa8] sm:$0xff]
    %v73 = vld [vmem:[#allocation2 + $0xb0] sm:$0xf]
    %v74 = vld [vmem:[#allocation2 + $0xb4] sm:$0xff]
    %v75 = vld [vmem:[#allocation2 + $0xbc] sm:$0xf]
    %v76 = vld [vmem:[#allocation2 + $0xc0] sm:$0xff]
    %v77 = vld [vmem:[#allocation2 + $0xc8] sm:$0xf]
    %v78 = vld [vmem:[#allocation2 + $0xcc] sm:$0xff]
    %v79 = vld [vmem:[#allocation2 + $0xd4] sm:$0xf]
    %v80 = vld [vmem:[#allocation2 + $0xd8] sm:$0xff]
    %v81 = vld [vmem:[#allocation2 + $0xe0] sm:$0xf]
    %v82 = vld [vmem:[#allocation2 + $0xe4] sm:$0xff]
    %v83 = vld [vmem:[#allocation2 + $0xec] sm:$0xf]
    %v84 = vld [vmem:[#allocation2 + $0xf0] sm:$0xff]
    %v85 = vld [vmem:[#allocation2 + $0xf8] sm:$0xf]
    %v86 = vld [vmem:[#allocation2 + $0xfc] sm:$0xff]
    %v87 = vld [vmem:[#allocation2 + $0x104] sm:$0xf]
    %v88 = vld [vmem:[#allocation2 + $0x108] sm:$0xff]
    %v89 = vld [vmem:[#allocation2 + $0x110] sm:$0xf]
    %v90 = vld [vmem:[#allocation2 + $0x114] sm:$0xff]
    %v91 = vld [vmem:[#allocation2 + $0x11c] sm:$0xf]
    %v92 = vld [vmem:[#allocation2 + $0x120] sm:$0xff]
    %v93 = vld [vmem:[#allocation2 + $0x128] sm:$0xf]
    %v94 = vld [vmem:[#allocation2 + $0x12c] sm:$0xff]
    %v95 = vld [vmem:[#allocation2 + $0x134] sm:$0xf]
    %v96 = vld [vmem:[#allocation2 + $0x138] sm:$0xff]
    %v97 = vld [vmem:[#allocation2 + $0x140] sm:$0xf]
    %v98 = vld [vmem:[#allocation2 + $0x144] sm:$0xff]
    %v99 = vld [vmem:[#allocation2 + $0x14c] sm:$0xf]
    %v100 = vld [vmem:[#allocation2 + $0x150] sm:$0xff]
    %v101 = vld [vmem:[#allocation2 + $0x158] sm:$0xf]
    %v102 = vld [vmem:[#allocation2 + $0x15c] sm:$0xff]
    %v103 = vld [vmem:[#allocation2 + $0x164] sm:$0xf]
    %v104 = vld [vmem:[#allocation2 + $0x168] sm:$0xff]
    %v105 = vld [vmem:[#allocation2 + $0x170] sm:$0xf]
    %v106 = vld [vmem:[#allocation2 + $0x174] sm:$0xff]
    %v107 = vld [vmem:[#allocation2 + $0x17c] sm:$0xf]
    %v108 = vld [vmem:[#allocation5] sm:$0xf]
    %v109 = vld [vmem:[#allocation5 + $0x4] sm:$0xf]
    %v110 = vld [vmem:[#allocation5 + $0x8] sm:$0xf]
    %v111 = vld [vmem:[#allocation5 + $0xc] sm:$0xf]
    %v112 = vld [vmem:[#allocation5 + $0x10] sm:$0xf]
    %v113 = vld [vmem:[#allocation5 + $0x14] sm:$0xf]
    %v114 = vld [vmem:[#allocation5 + $0x18] sm:$0xf]
    %v115 = vld [vmem:[#allocation5 + $0x1c] sm:$0xf]
    %v116 = vld [vmem:[#allocation5 + $0x20] sm:$0xf]
    %v117 = vld [vmem:[#allocation5 + $0x24] sm:$0xf]
    %v118 = vld [vmem:[#allocation5 + $0x28] sm:$0xf]
    %v119 = vld [vmem:[#allocation5 + $0x2c] sm:$0xf]
    %v120 = vld [vmem:[#allocation5 + $0x30] sm:$0xf]
    %v121 = vld [vmem:[#allocation5 + $0x34] sm:$0xf]
    %v122 = vld [vmem:[#allocation5 + $0x38] sm:$0xf]
    %v123 = vld [vmem:[#allocation5 + $0x3c] sm:$0xf]
    %v124 = vld [vmem:[#allocation5 + $0x40] sm:$0xf]
    %v125 = vld [vmem:[#allocation5 + $0x44] sm:$0xf]
    %v126 = vld [vmem:[#allocation5 + $0x48] sm:$0xf]
    %v127 = vld [vmem:[#allocation5 + $0x4c] sm:$0xf]
    %v128 = vld [vmem:[#allocation5 + $0x50] sm:$0xf]
    %v129 = vld [vmem:[#allocation5 + $0x54] sm:$0xf]
    %v130 = vld [vmem:[#allocation5 + $0x58] sm:$0xf]
    %v131 = vld [vmem:[#allocation5 + $0x5c] sm:$0xf]
    %v132 = vld [vmem:[#allocation5 + $0x60] sm:$0xf]
    %v133 = vld [vmem:[#allocation5 + $0x64] sm:$0xf]
    %v134 = vld [vmem:[#allocation5 + $0x68] sm:$0xf]
    %v135 = vld [vmem:[#allocation5 + $0x6c] sm:$0xf]
    %v136 = vld [vmem:[#allocation5 + $0x70] sm:$0xf]
    %v137 = vld [vmem:[#allocation5 + $0x74] sm:$0xf]
    %v138 = vld [vmem:[#allocation5 + $0x78] sm:$0xf]
    %v139 = vld [vmem:[#allocation5 + $0x7c] sm:$0xf]
    %v140 = vld [vmem:[#allocation5 + $0x80] sm:$0xf]
    %v141 = vld [vmem:[#allocation5 + $0x84] sm:$0xf]
    %v142 = vld [vmem:[#allocation5 + $0x88] sm:$0xf]
    %v143 = vld [vmem:[#allocation5 + $0x8c] sm:$0xf]
    %v144 = vld [vmem:[#allocation5 + $0x90] sm:$0xf]
    %v145 = vld [vmem:[#allocation5 + $0x94] sm:$0xf]
    %v146 = vld [vmem:[#allocation5 + $0x98] sm:$0xf]
    %v147 = vld [vmem:[#allocation5 + $0x9c] sm:$0xf]
    %v148 = vld [vmem:[#allocation5 + $0xa0] sm:$0xf]
    %v149 = vld [vmem:[#allocation5 + $0xa4] sm:$0xf]
    %v150 = vld [vmem:[#allocation5 + $0xa8] sm:$0xf]
    %v151 = vld [vmem:[#allocation5 + $0xac] sm:$0xf]
    %v152 = vld [vmem:[#allocation5 + $0xb0] sm:$0xf]
    %v153 = vld [vmem:[#allocation5 + $0xb4] sm:$0xf]
    %v154 = vld [vmem:[#allocation5 + $0xb8] sm:$0xf]
    %v155 = vld [vmem:[#allocation5 + $0xbc] sm:$0xf]
    %v156 = vld [vmem:[%s2] sm:$0x1]
    %v158 = vlaneseq
    %v159 = vshrl.u32 %v158, 7
    %v160 = vsub.s32 0, %v159
    %v161 = vrot.slane %v156, %v160
    %v227 = vunpack.c.l.b16 %v44
    %v228 = vunpack.c.h.b16 %v44
    %v229 = vunpack.c.l.b16 %v45
    %v230 = vunpack.c.l.b16 %v46
    %v231 = vunpack.c.h.b16 %v46
    %v232 = vunpack.c.l.b16 %v47
    %v233 = vunpack.c.l.b16 %v48
    %v234 = vunpack.c.h.b16 %v48
    %v235 = vunpack.c.l.b16 %v49
    %v236 = vunpack.c.l.b16 %v50
    %v237 = vunpack.c.h.b16 %v50
    %v238 = vunpack.c.l.b16 %v51
    %v239 = vunpack.c.l.b16 %v52
    %v240 = vunpack.c.h.b16 %v52
    %v241 = vunpack.c.l.b16 %v53
    %v242 = vunpack.c.l.b16 %v54
    %v243 = vunpack.c.h.b16 %v54
    %v244 = vunpack.c.l.b16 %v55
    %v245 = vunpack.c.l.b16 %v56
    %v246 = vunpack.c.h.b16 %v56
    %v247 = vunpack.c.l.b16 %v57
    %v248 = vunpack.c.l.b16 %v58
    %v249 = vunpack.c.h.b16 %v58
    %v250 = vunpack.c.l.b16 %v59
    %v251 = vunpack.c.l.b16 %v60
    %v252 = vunpack.c.h.b16 %v60
    %v253 = vunpack.c.l.b16 %v61
    %v254 = vunpack.c.l.b16 %v62
    %v255 = vunpack.c.h.b16 %v62
    %v256 = vunpack.c.l.b16 %v63
    %v257 = vunpack.c.l.b16 %v64
    %v258 = vunpack.c.h.b16 %v64
    %v259 = vunpack.c.l.b16 %v65
    %v260 = vunpack.c.l.b16 %v66
    %v261 = vunpack.c.h.b16 %v66
    %v262 = vunpack.c.l.b16 %v67
    %v263 = vunpack.c.l.b16 %v68
    %v264 = vunpack.c.h.b16 %v68
    %v265 = vunpack.c.l.b16 %v69
    %v266 = vunpack.c.l.b16 %v70
    %v267 = vunpack.c.h.b16 %v70
    %v268 = vunpack.c.l.b16 %v71
    %v269 = vunpack.c.l.b16 %v72
    %v270 = vunpack.c.h.b16 %v72
    %v271 = vunpack.c.l.b16 %v73
    %v272 = vunpack.c.l.b16 %v74
    %v273 = vunpack.c.h.b16 %v74
    %v274 = vunpack.c.l.b16 %v75
    %v275 = vunpack.c.l.b16 %v76
    %v276 = vunpack.c.h.b16 %v76
    %v277 = vunpack.c.l.b16 %v77
    %v278 = vunpack.c.l.b16 %v78
    %v279 = vunpack.c.h.b16 %v78
    %v280 = vunpack.c.l.b16 %v79
    %v281 = vunpack.c.l.b16 %v80
    %v282 = vunpack.c.h.b16 %v80
    %v283 = vunpack.c.l.b16 %v81
    %v284 = vunpack.c.l.b16 %v82
    %v285 = vunpack.c.h.b16 %v82
    %v286 = vunpack.c.l.b16 %v83
    %v287 = vunpack.c.l.b16 %v84
    %v288 = vunpack.c.h.b16 %v84
    %v289 = vunpack.c.l.b16 %v85
    %v290 = vunpack.c.l.b16 %v86
    %v291 = vunpack.c.h.b16 %v86
    %v292 = vunpack.c.l.b16 %v87
    %v293 = vunpack.c.l.b16 %v88
    %v294 = vunpack.c.h.b16 %v88
    %v295 = vunpack.c.l.b16 %v89
    %v296 = vunpack.c.l.b16 %v90
    %v297 = vunpack.c.h.b16 %v90
    %v298 = vunpack.c.l.b16 %v91
    %v299 = vunpack.c.l.b16 %v92
    %v300 = vunpack.c.h.b16 %v92
    %v301 = vunpack.c.l.b16 %v93
    %v302 = vunpack.c.l.b16 %v94
    %v303 = vunpack.c.h.b16 %v94
    %v304 = vunpack.c.l.b16 %v95
    %v305 = vunpack.c.l.b16 %v96
    %v306 = vunpack.c.h.b16 %v96
    %v307 = vunpack.c.l.b16 %v97
    %v308 = vunpack.c.l.b16 %v98
    %v309 = vunpack.c.h.b16 %v98
    %v310 = vunpack.c.l.b16 %v99
    %v311 = vunpack.c.l.b16 %v100
    %v312 = vunpack.c.h.b16 %v100
    %v313 = vunpack.c.l.b16 %v101
    %v314 = vunpack.c.l.b16 %v102
    %v315 = vunpack.c.h.b16 %v102
    %v316 = vunpack.c.l.b16 %v103
    %v317 = vunpack.c.l.b16 %v104
    %v318 = vunpack.c.h.b16 %v104
    %v319 = vunpack.c.l.b16 %v105
    %v320 = vunpack.c.l.b16 %v106
    %v321 = vunpack.c.h.b16 %v106
    %v322 = vunpack.c.l.b16 %v107
    %v323 = vpack.c.b16 %v230, %v227
    %v324 = vpack.c.b16 %v231, %v228
    %v325 = vpack.c.b16 %v232, %v229
    %v326 = vpack.c.b16 %v236, %v233
    %v327 = vpack.c.b16 %v237, %v234
    %v328 = vpack.c.b16 %v238, %v235
    %v329 = vpack.c.b16 %v242, %v239
    %v330 = vpack.c.b16 %v243, %v240
    %v331 = vpack.c.b16 %v244, %v241
    %v332 = vpack.c.b16 %v248, %v245
    %v333 = vpack.c.b16 %v249, %v246
    %v334 = vpack.c.b16 %v250, %v247
    %v335 = vpack.c.b16 %v254, %v251
    %v336 = vpack.c.b16 %v255, %v252
    %v337 = vpack.c.b16 %v256, %v253
    %v338 = vpack.c.b16 %v260, %v257
    %v339 = vpack.c.b16 %v261, %v258
    %v340 = vpack.c.b16 %v262, %v259
    %v341 = vpack.c.b16 %v266, %v263
    %v342 = vpack.c.b16 %v267, %v264
    %v343 = vpack.c.b16 %v268, %v265
    %v344 = vpack.c.b16 %v272, %v269
    %v345 = vpack.c.b16 %v273, %v270
    %v346 = vpack.c.b16 %v274, %v271
    %v347 = vpack.c.b16 %v278, %v275
    %v348 = vpack.c.b16 %v279, %v276
    %v349 = vpack.c.b16 %v280, %v277
    %v350 = vpack.c.b16 %v284, %v281
    %v351 = vpack.c.b16 %v285, %v282
    %v352 = vpack.c.b16 %v286, %v283
    %v353 = vpack.c.b16 %v290, %v287
    %v354 = vpack.c.b16 %v291, %v288
    %v355 = vpack.c.b16 %v292, %v289
    %v356 = vpack.c.b16 %v296, %v293
    %v357 = vpack.c.b16 %v297, %v294
    %v358 = vpack.c.b16 %v298, %v295
    %v359 = vpack.c.b16 %v302, %v299
    %v360 = vpack.c.b16 %v303, %v300
    %v361 = vpack.c.b16 %v304, %v301
    %v362 = vpack.c.b16 %v308, %v305
    %v363 = vpack.c.b16 %v309, %v306
    %v364 = vpack.c.b16 %v310, %v307
    %v365 = vpack.c.b16 %v314, %v311
    %v366 = vpack.c.b16 %v315, %v312
    %v367 = vpack.c.b16 %v316, %v313
    %v368 = vpack.c.b16 %v320, %v317
    %v369 = vpack.c.b16 %v321, %v318
    %v370 = vpack.c.b16 %v322, %v319
    %v467 = vunpack.c.l.b16 %v108
    %v468 = vunpack.c.l.b16 %v109
    %v469 = vunpack.c.l.b16 %v110
    %v470 = vunpack.c.l.b16 %v111
    %v471 = vunpack.c.l.b16 %v112
    %v472 = vunpack.c.l.b16 %v113
    %v473 = vunpack.c.l.b16 %v114
    %v474 = vunpack.c.l.b16 %v115
    %v475 = vunpack.c.l.b16 %v116
    %v476 = vunpack.c.l.b16 %v117
    %v477 = vunpack.c.l.b16 %v118
    %v478 = vunpack.c.l.b16 %v119
    %v479 = vunpack.c.l.b16 %v120
    %v480 = vunpack.c.l.b16 %v121
    %v481 = vunpack.c.l.b16 %v122
    %v482 = vunpack.c.l.b16 %v123
    %v483 = vunpack.c.l.b16 %v124
    %v484 = vunpack.c.l.b16 %v125
    %v485 = vunpack.c.l.b16 %v126
    %v486 = vunpack.c.l.b16 %v127
    %v487 = vunpack.c.l.b16 %v128
    %v488 = vunpack.c.l.b16 %v129
    %v489 = vunpack.c.l.b16 %v130
    %v490 = vunpack.c.l.b16 %v131
    %v491 = vunpack.c.l.b16 %v132
    %v492 = vunpack.c.l.b16 %v133
    %v493 = vunpack.c.l.b16 %v134
    %v494 = vunpack.c.l.b16 %v135
    %v495 = vunpack.c.l.b16 %v136
    %v496 = vunpack.c.l.b16 %v137
    %v497 = vunpack.c.l.b16 %v138
    %v498 = vunpack.c.l.b16 %v139
    %v499 = vunpack.c.l.b16 %v140
    %v500 = vunpack.c.l.b16 %v141
    %v501 = vunpack.c.l.b16 %v142
    %v502 = vunpack.c.l.b16 %v143
    %v503 = vunpack.c.l.b16 %v144
    %v504 = vunpack.c.l.b16 %v145
    %v505 = vunpack.c.l.b16 %v146
    %v506 = vunpack.c.l.b16 %v147
    %v507 = vunpack.c.l.b16 %v148
    %v508 = vunpack.c.l.b16 %v149
    %v509 = vunpack.c.l.b16 %v150
    %v510 = vunpack.c.l.b16 %v151
    %v511 = vunpack.c.l.b16 %v152
    %v512 = vunpack.c.l.b16 %v153
    %v513 = vunpack.c.l.b16 %v154
    %v514 = vunpack.c.l.b16 %v155
    %v515 = vpack.c.b16 %v468, %v467
    %v516 = vpack.c.b16 %v470, %v469
    %v517 = vpack.c.b16 %v472, %v471
    %v518 = vpack.c.b16 %v474, %v473
    %v519 = vpack.c.b16 %v476, %v475
    %v520 = vpack.c.b16 %v478, %v477
    %v521 = vpack.c.b16 %v480, %v479
    %v522 = vpack.c.b16 %v482, %v481
    %v523 = vpack.c.b16 %v484, %v483
    %v524 = vpack.c.b16 %v486, %v485
    %v525 = vpack.c.b16 %v488, %v487
    %v526 = vpack.c.b16 %v490, %v489
    %v527 = vpack.c.b16 %v492, %v491
    %v528 = vpack.c.b16 %v494, %v493
    %v529 = vpack.c.b16 %v496, %v495
    %v530 = vpack.c.b16 %v498, %v497
    %v531 = vpack.c.b16 %v500, %v499
    %v532 = vpack.c.b16 %v502, %v501
    %v533 = vpack.c.b16 %v504, %v503
    %v534 = vpack.c.b16 %v506, %v505
    %v535 = vpack.c.b16 %v508, %v507
    %v536 = vpack.c.b16 %v510, %v509
    %v537 = vpack.c.b16 %v512, %v511
    %v538 = vpack.c.b16 %v514, %v513
    %563 = vmatprep.subr.bf16.mxu0 0
    %564 = vmatpush1.bf16.msra.mxu0 %v522
    %565 = vmatprep.subr.bf16.mxu0 0
    %566 = vmatpush1.bf16.msra.mxu0 %v521
    %567 = vmatprep.subr.bf16.mxu0 0
    %568 = vmatpush1.bf16.msra.mxu0 %v520
    %569 = vmatprep.subr.bf16.mxu0 0
    %570 = vmatpush1.bf16.msra.mxu0 %v519
    %571 = vmatprep.subr.bf16.mxu0 0
    %572 = vmatpush1.bf16.msra.mxu0 %v518
    %573 = vmatprep.subr.bf16.mxu0 0
    %574 = vmatpush1.bf16.msra.mxu0 %v517
    %575 = vmatprep.subr.bf16.mxu0 0
    %576 = vmatpush1.bf16.msra.mxu0 %v516
    %577 = vmatprep.subr.bf16.mxu0 0
    %578 = vmatpush1.bf16.msra.mxu0 %v515
    %579 = vmatprep.subr.bf16.mxu0 0
    %580 = vmatpush2.bf16.msra.mxu0 %v530
    %581 = vmatprep.subr.bf16.mxu0 0
    %582 = vmatpush2.bf16.msra.mxu0 %v529
    %583 = vmatprep.subr.bf16.mxu0 0
    %584 = vmatpush2.bf16.msra.mxu0 %v528
    %585 = vmatprep.subr.bf16.mxu0 0
    %586 = vmatpush2.bf16.msra.mxu0 %v527
    %587 = vmatprep.subr.bf16.mxu0 0
    %588 = vmatpush2.bf16.msra.mxu0 %v526
    %589 = vmatprep.subr.bf16.mxu0 0
    %590 = vmatpush2.bf16.msra.mxu0 %v525
    %591 = vmatprep.subr.bf16.mxu0 0
    %592 = vmatpush2.bf16.msra.mxu0 %v524
    %593 = vmatprep.subr.bf16.mxu0 0
    %594 = vmatpush2.bf16.msra.mxu0 %v523
    %595 = vmatprep.mubr.bf16.mxu0 %v324
    %596 = vmatmul.mubr.bf16.gmra.mxu0 %v323
    %v597 = vpop.f32.mrf.mxu0
    %v598 = vadd.f32 %v161, %v597
    %v599 = vpop.f32.mrf.mxu0
    %v600 = vpop.f32.mrf.mxu0
    %v601 = vadd.f32 %v161, %v600
    %v602 = vpop.f32.mrf.mxu0
    %603 = vmatprep.mubr.bf16.mxu0 %v327
    %604 = vmatmul.mubr.bf16.gmra.mxu0 %v326
    %v605 = vpop.f32.mrf.mxu0
    %v606 = vadd.f32 %v161, %v605
    %v607 = vpop.f32.mrf.mxu0
    %v608 = vpop.f32.mrf.mxu0
    %v609 = vadd.f32 %v161, %v608
    %v610 = vpop.f32.mrf.mxu0
    %611 = vmatprep.mubr.bf16.mxu0 %v330
    %612 = vmatmul.mubr.bf16.gmra.mxu0 %v329
    %v613 = vpop.f32.mrf.mxu0
    %v614 = vadd.f32 %v161, %v613
    %v615 = vpop.f32.mrf.mxu0
    %v616 = vpop.f32.mrf.mxu0
    %v617 = vadd.f32 %v161, %v616
    %v618 = vpop.f32.mrf.mxu0
    %619 = vmatprep.mubr.bf16.mxu0 %v333
    %620 = vmatmul.mubr.bf16.gmra.mxu0 %v332
    %v621 = vpop.f32.mrf.mxu0
    %v622 = vadd.f32 %v161, %v621
    %v623 = vpop.f32.mrf.mxu0
    %v624 = vpop.f32.mrf.mxu0
    %v625 = vadd.f32 %v161, %v624
    %v626 = vpop.f32.mrf.mxu0
    %627 = vmatprep.mubr.bf16.mxu0 %v336
    %628 = vmatmul.mubr.bf16.gmra.mxu0 %v335
    %v629 = vpop.f32.mrf.mxu0
    %v630 = vadd.f32 %v161, %v629
    %v631 = vpop.f32.mrf.mxu0
    %v632 = vpop.f32.mrf.mxu0
    %v633 = vadd.f32 %v161, %v632
    %v634 = vpop.f32.mrf.mxu0
    %635 = vmatprep.mubr.bf16.mxu0 %v339
    %636 = vmatmul.mubr.bf16.gmra.mxu0 %v338
    %v637 = vpop.f32.mrf.mxu0
    %v638 = vadd.f32 %v161, %v637
    %v639 = vpop.f32.mrf.mxu0
    %v640 = vpop.f32.mrf.mxu0
    %v641 = vadd.f32 %v161, %v640
    %v642 = vpop.f32.mrf.mxu0
    %643 = vmatprep.mubr.bf16.mxu0 %v342
    %644 = vmatmul.mubr.bf16.gmra.mxu0 %v341
    %v645 = vpop.f32.mrf.mxu0
    %v646 = vadd.f32 %v161, %v645
    %v647 = vpop.f32.mrf.mxu0
    %v648 = vpop.f32.mrf.mxu0
    %v649 = vadd.f32 %v161, %v648
    %v650 = vpop.f32.mrf.mxu0
    %651 = vmatprep.mubr.bf16.mxu0 %v345
    %652 = vmatmul.mubr.bf16.gmra.mxu0 %v344
    %v653 = vpop.f32.mrf.mxu0
    %v654 = vadd.f32 %v161, %v653
    %v655 = vpop.f32.mrf.mxu0
    %v656 = vpop.f32.mrf.mxu0
    %v657 = vadd.f32 %v161, %v656
    %v658 = vpop.f32.mrf.mxu0
    %659 = vmatprep.mubr.bf16.mxu0 %v348
    %660 = vmatmul.mubr.bf16.gmra.mxu0 %v347
    %v661 = vpop.f32.mrf.mxu0
    %v662 = vadd.f32 %v161, %v661
    %v663 = vpop.f32.mrf.mxu0
    %v664 = vpop.f32.mrf.mxu0
    %v665 = vadd.f32 %v161, %v664
    %v666 = vpop.f32.mrf.mxu0
    %667 = vmatprep.mubr.bf16.mxu0 %v351
    %668 = vmatmul.mubr.bf16.gmra.mxu0 %v350
    %v669 = vpop.f32.mrf.mxu0
    %v670 = vadd.f32 %v161, %v669
    %v671 = vpop.f32.mrf.mxu0
    %v672 = vpop.f32.mrf.mxu0
    %v673 = vadd.f32 %v161, %v672
    %v674 = vpop.f32.mrf.mxu0
    %675 = vmatprep.mubr.bf16.mxu0 %v354
    %676 = vmatmul.mubr.bf16.gmra.mxu0 %v353
    %v677 = vpop.f32.mrf.mxu0
    %v678 = vadd.f32 %v161, %v677
    %v679 = vpop.f32.mrf.mxu0
    %v680 = vpop.f32.mrf.mxu0
    %v681 = vadd.f32 %v161, %v680
    %v682 = vpop.f32.mrf.mxu0
    %683 = vmatprep.mubr.bf16.mxu0 %v357
    %684 = vmatmul.mubr.bf16.gmra.mxu0 %v356
    %v685 = vpop.f32.mrf.mxu0
    %v686 = vadd.f32 %v161, %v685
    %v687 = vpop.f32.mrf.mxu0
    %v688 = vpop.f32.mrf.mxu0
    %v689 = vadd.f32 %v161, %v688
    %v690 = vpop.f32.mrf.mxu0
    %691 = vmatprep.mubr.bf16.mxu0 %v360
    %692 = vmatmul.mubr.bf16.gmra.mxu0 %v359
    %v693 = vpop.f32.mrf.mxu0
    %v694 = vadd.f32 %v161, %v693
    %v695 = vpop.f32.mrf.mxu0
    %v696 = vpop.f32.mrf.mxu0
    %v697 = vadd.f32 %v161, %v696
    %v698 = vpop.f32.mrf.mxu0
    %699 = vmatprep.mubr.bf16.mxu0 %v363
    %700 = vmatmul.mubr.bf16.gmra.mxu0 %v362
    %v701 = vpop.f32.mrf.mxu0
    %v702 = vadd.f32 %v161, %v701
    %v703 = vpop.f32.mrf.mxu0
    %v704 = vpop.f32.mrf.mxu0
    %v705 = vadd.f32 %v161, %v704
    %v706 = vpop.f32.mrf.mxu0
    %707 = vmatprep.mubr.bf16.mxu0 %v366
    %708 = vmatmul.mubr.bf16.gmra.mxu0 %v365
    %v709 = vpop.f32.mrf.mxu0
    %v710 = vadd.f32 %v161, %v709
    %v711 = vpop.f32.mrf.mxu0
    %v712 = vpop.f32.mrf.mxu0
    %v713 = vadd.f32 %v161, %v712
    %v714 = vpop.f32.mrf.mxu0
    %715 = vmatprep.mubr.bf16.mxu0 %v369
    %716 = vmatmul.mubr.bf16.gmra.mxu0 %v368
    %v717 = vpop.f32.mrf.mxu0
    %v718 = vadd.f32 %v161, %v717
    %v719 = vpop.f32.mrf.mxu0
    %v720 = vpop.f32.mrf.mxu0
    %v721 = vadd.f32 %v161, %v720
    %v722 = vpop.f32.mrf.mxu0
    %723 = vdwg.mxu0
    %724 = vmatprep.subr.bf16.mxu0 0
    %725 = vmatpush1.bf16.msra.mxu0 %v538
    %726 = vmatprep.subr.bf16.mxu0 0
    %727 = vmatpush1.bf16.msra.mxu0 %v537
    %728 = vmatprep.subr.bf16.mxu0 0
    %729 = vmatpush1.bf16.msra.mxu0 %v536
    %730 = vmatprep.subr.bf16.mxu0 0
    %731 = vmatpush1.bf16.msra.mxu0 %v535
    %732 = vmatprep.subr.bf16.mxu0 0
    %733 = vmatpush1.bf16.msra.mxu0 %v534
    %734 = vmatprep.subr.bf16.mxu0 0
    %735 = vmatpush1.bf16.msra.mxu0 %v533
    %736 = vmatprep.subr.bf16.mxu0 0
    %737 = vmatpush1.bf16.msra.mxu0 %v532
    %738 = vmatprep.subr.bf16.mxu0 0
    %739 = vmatpush1.bf16.msra.mxu0 %v531
    %740 = vmatprep.subr.bf16.mxu0 0
    %741 = vmatpush2.bf16.msra.mxu0 0
    %742 = vmatprep.subr.bf16.mxu0 0
    %743 = vmatpush2.bf16.msra.mxu0 0
    %744 = vmatprep.subr.bf16.mxu0 0
    %745 = vmatpush2.bf16.msra.mxu0 0
    %746 = vmatprep.subr.bf16.mxu0 0
    %747 = vmatpush2.bf16.msra.mxu0 0
    %748 = vmatprep.subr.bf16.mxu0 0
    %749 = vmatpush2.bf16.msra.mxu0 0
    %750 = vmatprep.subr.bf16.mxu0 0
    %751 = vmatpush2.bf16.msra.mxu0 0
    %752 = vmatprep.subr.bf16.mxu0 0
    %753 = vmatpush2.bf16.msra.mxu0 0
    %754 = vmatprep.subr.bf16.mxu0 0
    %755 = vmatpush2.bf16.msra.mxu0 0
    %756 = vmatprep.mubr.bf16.mxu0 0
    %757 = vmatmul.mubr.bf16.gmra.mxu0 %v325
    %v758 = vpop.f32.mrf.mxu0
    %v759 = vadd.f32 %v598, %v758
    %v760 = vpop.f32.mrf.mxu0
    %v761 = vpop.f32.mrf.mxu0
    %v762 = vadd.f32 %v601, %v761
    %v763 = vpop.f32.mrf.mxu0
    %764 = vmatprep.mubr.bf16.mxu0 0
    %765 = vmatmul.mubr.bf16.gmra.mxu0 %v328
    %v766 = vpop.f32.mrf.mxu0
    %v767 = vadd.f32 %v606, %v766
    %v768 = vpop.f32.mrf.mxu0
    %v769 = vpop.f32.mrf.mxu0
    %v770 = vadd.f32 %v609, %v769
    %v771 = vpop.f32.mrf.mxu0
    %772 = vmatprep.mubr.bf16.mxu0 0
    %773 = vmatmul.mubr.bf16.gmra.mxu0 %v331
    %v774 = vpop.f32.mrf.mxu0
    %v775 = vadd.f32 %v614, %v774
    %v776 = vpop.f32.mrf.mxu0
    %v777 = vpop.f32.mrf.mxu0
    %v778 = vadd.f32 %v617, %v777
    %v779 = vpop.f32.mrf.mxu0
    %780 = vmatprep.mubr.bf16.mxu0 0
    %781 = vmatmul.mubr.bf16.gmra.mxu0 %v334
    %v782 = vpop.f32.mrf.mxu0
    %v783 = vadd.f32 %v622, %v782
    %v784 = vpop.f32.mrf.mxu0
    %v785 = vpop.f32.mrf.mxu0
    %v786 = vadd.f32 %v625, %v785
    %v787 = vpop.f32.mrf.mxu0
    %788 = vmatprep.mubr.bf16.mxu0 0
    %789 = vmatmul.mubr.bf16.gmra.mxu0 %v337
    %v790 = vpop.f32.mrf.mxu0
    %v791 = vadd.f32 %v630, %v790
    %v792 = vpop.f32.mrf.mxu0
    %v793 = vpop.f32.mrf.mxu0
    %v794 = vadd.f32 %v633, %v793
    %v795 = vpop.f32.mrf.mxu0
    %796 = vmatprep.mubr.bf16.mxu0 0
    %797 = vmatmul.mubr.bf16.gmra.mxu0 %v340
    %v798 = vpop.f32.mrf.mxu0
    %v799 = vadd.f32 %v638, %v798
    %v800 = vpop.f32.mrf.mxu0
    %v801 = vpop.f32.mrf.mxu0
    %v802 = vadd.f32 %v641, %v801
    %v803 = vpop.f32.mrf.mxu0
    %804 = vmatprep.mubr.bf16.mxu0 0
    %805 = vmatmul.mubr.bf16.gmra.mxu0 %v343
    %v806 = vpop.f32.mrf.mxu0
    %v807 = vadd.f32 %v646, %v806
    %v808 = vpop.f32.mrf.mxu0
    %v809 = vpop.f32.mrf.mxu0
    %v810 = vadd.f32 %v649, %v809
    %v811 = vpop.f32.mrf.mxu0
    %812 = vmatprep.mubr.bf16.mxu0 0
    %813 = vmatmul.mubr.bf16.gmra.mxu0 %v346
    %v814 = vpop.f32.mrf.mxu0
    %v815 = vadd.f32 %v654, %v814
    %v816 = vpop.f32.mrf.mxu0
    %v817 = vpop.f32.mrf.mxu0
    %v818 = vadd.f32 %v657, %v817
    %v819 = vpop.f32.mrf.mxu0
    %820 = vmatprep.mubr.bf16.mxu0 0
    %821 = vmatmul.mubr.bf16.gmra.mxu0 %v349
    %v822 = vpop.f32.mrf.mxu0
    %v823 = vadd.f32 %v662, %v822
    %v824 = vpop.f32.mrf.mxu0
    %v825 = vpop.f32.mrf.mxu0
    %v826 = vadd.f32 %v665, %v825
    %v827 = vpop.f32.mrf.mxu0
    %828 = vmatprep.mubr.bf16.mxu0 0
    %829 = vmatmul.mubr.bf16.gmra.mxu0 %v352
    %v830 = vpop.f32.mrf.mxu0
    %v831 = vadd.f32 %v670, %v830
    %v832 = vpop.f32.mrf.mxu0
    %v833 = vpop.f32.mrf.mxu0
    %v834 = vadd.f32 %v673, %v833
    %v835 = vpop.f32.mrf.mxu0
    %836 = vmatprep.mubr.bf16.mxu0 0
    %837 = vmatmul.mubr.bf16.gmra.mxu0 %v355
    %v838 = vpop.f32.mrf.mxu0
    %v839 = vadd.f32 %v678, %v838
    %v840 = vpop.f32.mrf.mxu0
    %v841 = vpop.f32.mrf.mxu0
    %v842 = vadd.f32 %v681, %v841
    %v843 = vpop.f32.mrf.mxu0
    %844 = vmatprep.mubr.bf16.mxu0 0
    %845 = vmatmul.mubr.bf16.gmra.mxu0 %v358
    %v846 = vpop.f32.mrf.mxu0
    %v847 = vadd.f32 %v686, %v846
    %v848 = vpop.f32.mrf.mxu0
    %v849 = vpop.f32.mrf.mxu0
    %v850 = vadd.f32 %v689, %v849
    %v851 = vpop.f32.mrf.mxu0
    %852 = vmatprep.mubr.bf16.mxu0 0
    %853 = vmatmul.mubr.bf16.gmra.mxu0 %v361
    %v854 = vpop.f32.mrf.mxu0
    %v855 = vadd.f32 %v694, %v854
    %v856 = vpop.f32.mrf.mxu0
    %v857 = vpop.f32.mrf.mxu0
    %v858 = vadd.f32 %v697, %v857
    %v859 = vpop.f32.mrf.mxu0
    %860 = vmatprep.mubr.bf16.mxu0 0
    %861 = vmatmul.mubr.bf16.gmra.mxu0 %v364
    %v862 = vpop.f32.mrf.mxu0
    %v863 = vadd.f32 %v702, %v862
    %v864 = vpop.f32.mrf.mxu0
    %v865 = vpop.f32.mrf.mxu0
    %v866 = vadd.f32 %v705, %v865
    %v867 = vpop.f32.mrf.mxu0
    %868 = vmatprep.mubr.bf16.mxu0 0
    %869 = vmatmul.mubr.bf16.gmra.mxu0 %v367
    %v870 = vpop.f32.mrf.mxu0
    %v871 = vadd.f32 %v710, %v870
    %v872 = vpop.f32.mrf.mxu0
    %v873 = vpop.f32.mrf.mxu0
    %v874 = vadd.f32 %v713, %v873
    %v875 = vpop.f32.mrf.mxu0
    %876 = vmatprep.mubr.bf16.mxu0 0
    %877 = vmatmul.mubr.bf16.gmra.mxu0 %v370
    %v878 = vpop.f32.mrf.mxu0
    %v879 = vadd.f32 %v718, %v878
    %v880 = vpop.f32.mrf.mxu0
    %v881 = vpop.f32.mrf.mxu0
    %v882 = vadd.f32 %v721, %v881
    %v883 = vpop.f32.mrf.mxu0
    %884 = vdwg.mxu0
    %v885 = vmax.f32 %v759, 0.0
    %v886 = vmax.f32 %v762, 0.0
    %v887 = vmax.f32 %v767, 0.0
    %v888 = vmax.f32 %v770, 0.0
    %v889 = vmax.f32 %v775, 0.0
    %v890 = vmax.f32 %v778, 0.0
    %v891 = vmax.f32 %v783, 0.0
    %v892 = vmax.f32 %v786, 0.0
    %v893 = vmax.f32 %v791, 0.0
    %v894 = vmax.f32 %v794, 0.0
    %v895 = vmax.f32 %v799, 0.0
    %v896 = vmax.f32 %v802, 0.0
    %v897 = vmax.f32 %v807, 0.0
    %v898 = vmax.f32 %v810, 0.0
    %v899 = vmax.f32 %v815, 0.0
    %v900 = vmax.f32 %v818, 0.0
    %v901 = vmax.f32 %v823, 0.0
    %v902 = vmax.f32 %v826, 0.0
    %v903 = vmax.f32 %v831, 0.0
    %v904 = vmax.f32 %v834, 0.0
    %v905 = vmax.f32 %v839, 0.0
    %v906 = vmax.f32 %v842, 0.0
    %v907 = vmax.f32 %v847, 0.0
    %v908 = vmax.f32 %v850, 0.0
    %v909 = vmax.f32 %v855, 0.0
    %v910 = vmax.f32 %v858, 0.0
    %v911 = vmax.f32 %v863, 0.0
    %v912 = vmax.f32 %v866, 0.0
    %v913 = vmax.f32 %v871, 0.0
    %v914 = vmax.f32 %v874, 0.0
    %v915 = vmax.f32 %v879, 0.0
    %v916 = vmax.f32 %v882, 0.0
    %v917 = vpack.c.bf16 %v886, %v885
    %v918 = vpack.c.bf16 %v888, %v887
    %v919 = vpack.c.bf16 %v890, %v889
    %v920 = vpack.c.bf16 %v892, %v891
    %v921 = vpack.c.bf16 %v894, %v893
    %v922 = vpack.c.bf16 %v896, %v895
    %v923 = vpack.c.bf16 %v898, %v897
    %v924 = vpack.c.bf16 %v900, %v899
    %v925 = vpack.c.bf16 %v902, %v901
    %v926 = vpack.c.bf16 %v904, %v903
    %v927 = vpack.c.bf16 %v906, %v905
    %v928 = vpack.c.bf16 %v908, %v907
    %v929 = vpack.c.bf16 %v910, %v909
    %v930 = vpack.c.bf16 %v912, %v911
    %v931 = vpack.c.bf16 %v914, %v913
    %v932 = vpack.c.bf16 %v916, %v915
    %v949 = vunpack.c.l.b16 %v917
    %v950 = vunpack.c.h.b16 %v917
    %v951 = vunpack.c.l.b16 %v918
    %v952 = vunpack.c.h.b16 %v918
    %v953 = vunpack.c.l.b16 %v919
    %v954 = vunpack.c.h.b16 %v919
    %v955 = vunpack.c.l.b16 %v920
    %v956 = vunpack.c.h.b16 %v920
    %v957 = vunpack.c.l.b16 %v921
    %v958 = vunpack.c.h.b16 %v921
    %v959 = vunpack.c.l.b16 %v922
    %v960 = vunpack.c.h.b16 %v922
    %v961 = vunpack.c.l.b16 %v923
    %v962 = vunpack.c.h.b16 %v923
    %v963 = vunpack.c.l.b16 %v924
    %v964 = vunpack.c.h.b16 %v924
    %v965 = vunpack.c.l.b16 %v925
    %v966 = vunpack.c.h.b16 %v925
    %v967 = vunpack.c.l.b16 %v926
    %v968 = vunpack.c.h.b16 %v926
    %v969 = vunpack.c.l.b16 %v927
    %v970 = vunpack.c.h.b16 %v927
    %v971 = vunpack.c.l.b16 %v928
    %v972 = vunpack.c.h.b16 %v928
    %v973 = vunpack.c.l.b16 %v929
    %v974 = vunpack.c.h.b16 %v929
    %v975 = vunpack.c.l.b16 %v930
    %v976 = vunpack.c.h.b16 %v930
    %v977 = vunpack.c.l.b16 %v931
    %v978 = vunpack.c.h.b16 %v931
    %v979 = vunpack.c.l.b16 %v932
    %v980 = vunpack.c.h.b16 %v932
    %v981 = vpack.c.b16 %v949, %v949
    %v982 = vpack.c.b16 %v950, %v950
    %v983 = vpack.c.b16 %v951, %v951
    %v984 = vpack.c.b16 %v952, %v952
    %v985 = vpack.c.b16 %v953, %v953
    %v986 = vpack.c.b16 %v954, %v954
    %v987 = vpack.c.b16 %v955, %v955
    %v988 = vpack.c.b16 %v956, %v956
    %v989 = vpack.c.b16 %v957, %v957
    %v990 = vpack.c.b16 %v958, %v958
    %v991 = vpack.c.b16 %v959, %v959
    %v992 = vpack.c.b16 %v960, %v960
    %v993 = vpack.c.b16 %v961, %v961
    %v994 = vpack.c.b16 %v962, %v962
    %v995 = vpack.c.b16 %v963, %v963
    %v996 = vpack.c.b16 %v964, %v964
    %v997 = vpack.c.b16 %v965, %v965
    %v998 = vpack.c.b16 %v966, %v966
    %v999 = vpack.c.b16 %v967, %v967
    %v1000 = vpack.c.b16 %v968, %v968
    %v1001 = vpack.c.b16 %v969, %v969
    %v1002 = vpack.c.b16 %v970, %v970
    %v1003 = vpack.c.b16 %v971, %v971
    %v1004 = vpack.c.b16 %v972, %v972
    %v1005 = vpack.c.b16 %v973, %v973
    %v1006 = vpack.c.b16 %v974, %v974
    %v1007 = vpack.c.b16 %v975, %v975
    %v1008 = vpack.c.b16 %v976, %v976
    %v1009 = vpack.c.b16 %v977, %v977
    %v1010 = vpack.c.b16 %v978, %v978
    %v1011 = vpack.c.b16 %v979, %v979
    %v1012 = vpack.c.b16 %v980, %v980
    %1045 = vst [vmem:[#allocation7] sm:$0xf] %v981
    %1046 = vst [vmem:[#allocation7 + $0x4] sm:$0xf] %v982
    %1047 = vst [vmem:[#allocation7 + $0x8] sm:$0xf] %v983
    %1048 = vst [vmem:[#allocation7 + $0xc] sm:$0xf] %v984
    %1049 = vst [vmem:[#allocation7 + $0x10] sm:$0xf] %v985
    %1050 = vst [vmem:[#allocation7 + $0x14] sm:$0xf] %v986
    %1051 = vst [vmem:[#allocation7 + $0x18] sm:$0xf] %v987
    %1052 = vst [vmem:[#allocation7 + $0x1c] sm:$0xf] %v988
    %1053 = vst [vmem:[#allocation7 + $0x20] sm:$0xf] %v989
    %1054 = vst [vmem:[#allocation7 + $0x24] sm:$0xf] %v990
    %1055 = vst [vmem:[#allocation7 + $0x28] sm:$0xf] %v991
    %1056 = vst [vmem:[#allocation7 + $0x2c] sm:$0xf] %v992
    %1057 = vst [vmem:[#allocation7 + $0x30] sm:$0xf] %v993
    %1058 = vst [vmem:[#allocation7 + $0x34] sm:$0xf] %v994
    %1059 = vst [vmem:[#allocation7 + $0x38] sm:$0xf] %v995
    %1060 = vst [vmem:[#allocation7 + $0x3c] sm:$0xf] %v996
    %1061 = vst [vmem:[#allocation7 + $0x40] sm:$0xf] %v997
    %1062 = vst [vmem:[#allocation7 + $0x44] sm:$0xf] %v998
    %1063 = vst [vmem:[#allocation7 + $0x48] sm:$0xf] %v999
    %1064 = vst [vmem:[#allocation7 + $0x4c] sm:$0xf] %v1000
    %1065 = vst [vmem:[#allocation7 + $0x50] sm:$0xf] %v1001
    %1066 = vst [vmem:[#allocation7 + $0x54] sm:$0xf] %v1002
    %1067 = vst [vmem:[#allocation7 + $0x58] sm:$0xf] %v1003
    %1068 = vst [vmem:[#allocation7 + $0x5c] sm:$0xf] %v1004
    %1069 = vst [vmem:[#allocation7 + $0x60] sm:$0xf] %v1005
    %1070 = vst [vmem:[#allocation7 + $0x64] sm:$0xf] %v1006
    %1071 = vst [vmem:[#allocation7 + $0x68] sm:$0xf] %v1007
    %1072 = vst [vmem:[#allocation7 + $0x6c] sm:$0xf] %v1008
    %1073 = vst [vmem:[#allocation7 + $0x70] sm:$0xf] %v1009
    %1074 = vst [vmem:[#allocation7 + $0x74] sm:$0xf] %v1010
    %1075 = vst [vmem:[#allocation7 + $0x78] sm:$0xf] %v1011
    %1076 = vst [vmem:[#allocation7 + $0x7c] sm:$0xf] %v1012
    // Predicated region
    $region22: #{tpu_custom_call.1} parent=1 // pred_check
      _
    $region23: #{tpu_custom_call.1} parent=1 // pred_check_branch
      %1078 = sbr.rel (0) target = $region25
    $region24: #{tpu_custom_call.1} parent=1 // pred_region
      %s1080 = ssub.s32 2048, 2048
      %1081 = vsyncadd [#allocation4], %s1080
      %s1082 = sshll.u32 [#allocation7], 4
      %s1083 = int_to_ptr.vmem [resolvable:$true] %s1082
      %1088 = dma.vmem_to_hbm [thread:$0]  %s1083, 2048, %s3, [#allocation4], 64, 64, 4
    $region25: #{tpu_custom_call.1} parent=1 // pred_fallthru
      _
    // Predicated region
    $region26: #{tpu_custom_call.1} parent=1 // pred_check
      _
    $region27: #{tpu_custom_call.1} parent=1 // pred_check_branch
      %1090 = sbr.rel (0) target = $region29
    $region28: #{tpu_custom_call.1} parent=1 // pred_region
      %1091 = dma.done [#allocation4], 2048
    $region29: #{tpu_custom_call.1} parent=1 // pred_fallthru
      _
    %1092 = vsyncpa [#allocation3], 1
    %1093 = vsyncpa [#allocation6], 1
    %1094 = vsyncpa [#allocation4], 1

</llo_original>
